<compile_context>
chip_gen: v5e
topology: v5e:2x2
jax: 0.10.0
libtpu: 0.0.40
codegen_flags: <defaults>
</compile_context>

<pallas_src>
import math

import jax
import jax.numpy as jnp
from jax import lax
from jax.experimental import pallas as pl
from jax.experimental.pallas import tpu as pltpu


def _round_up(x, m):
    return ((x + m - 1) // m) * m


def _gelu(x, approximate):
    if approximate:
        # tanh-approx GELU: tanh goes to the EUP slot (co-issues with the MXU).
        c = jnp.asarray(0.7978845608028654, x.dtype)   # sqrt(2/pi)
        a = jnp.asarray(0.044715, x.dtype)
        return 0.5 * x * (1.0 + jnp.tanh(c * (x + a * x * x * x)))
    inv_sqrt2 = jnp.asarray(0.7071067811865476, x.dtype)
    return 0.5 * x * (1.0 + lax.erf(x * inv_sqrt2))


def _make_mlp_kernel(approximate_gelu):
    def mlp_kernel(x_ref, w1_ref, b1_ref, w2_ref, b2_ref, o_ref, acc_ref):
        # x_ref:(tm,H) f32 | w1_ref:(H,tc) bf16 | b1_ref:(1,tc) f32
        # w2_ref:(tc,Lp) bf16 | b2_ref:(1,Lp) f32 | o_ref:(tm,Lp) | acc:(tm,Lp) f32
        k = pl.program_id(1)

        @pl.when(k == 0)
        def _():
            acc_ref[...] = jnp.zeros_like(acc_ref)

        # In-kernel bf16 cast of the activation tile (hides under the MXU).
        x_bf = x_ref[...].astype(w1_ref.dtype)
        h = jnp.dot(x_bf, w1_ref[...], preferred_element_type=jnp.float32)
        h = _gelu(h + b1_ref[...], approximate_gelu)          # f32 activation
        acc_ref[...] += jnp.dot(h.astype(w2_ref.dtype), w2_ref[...],
                                preferred_element_type=jnp.float32)

        @pl.when(k == pl.num_programs(1) - 1)
        def _():
            o_ref[...] = (acc_ref[...] + b2_ref[...]).astype(o_ref.dtype)

    return mlp_kernel


def _vmem_limit_bytes(frac=0.85, fallback=56 * 1024 * 1024):
    # ~85% of per-core VMEM: ~54 MiB on v7x (64 MiB phys), ~109 MiB on v5e/v6e.
    try:
        cap = pltpu.get_tpu_info().vmem_capacity_bytes
        return int(cap * frac)
    except Exception:
        return fallback


def prepare_mlp_params(w1, b1, w2, b2, *, k_chunk=512, lane_pad=128,
                       mxu_dtype=jnp.bfloat16):
    """One-time weight preparation: bf16 cast + lane/chunk padding.

    w1:[H,H], w2:[H,L] (already transposed vs. PyTorch); b1:(H,) or (1,H),
    b2:(L,) or (1,L).  Call once and reuse the result across forward calls so
    the f32->bf16 weight cast is not re-done per call.
    """
    H = w1.shape[0]
    L = w2.shape[1]
    b1 = jnp.asarray(b1).reshape(1, -1)
    b2 = jnp.asarray(b2).reshape(1, -1)

    # Lane-dense output: pad L up to a multiple of 128 (full-lane stores).
    Lp = _round_up(L, lane_pad)
    if Lp != L:
        w2 = jnp.pad(w2, ((0, 0), (0, Lp - L)))
        b2 = jnp.pad(b2, ((0, 0), (0, Lp - L)))

    # Chunk the intermediate dim so VMEM is bounded independent of H.
    # Zero-padding is numerically exact: gelu(0+0)=0 contributes nothing.
    if H <= k_chunk:
        tc, Hp = H, H
    else:
        tc = k_chunk                      # multiple of 256: full MXU passes
        Hp = _round_up(H, tc)
        if Hp != H:
            w1 = jnp.pad(w1, ((0, 0), (0, Hp - H)))
            b1 = jnp.pad(b1, ((0, 0), (0, Hp - H)))
            w2 = jnp.pad(w2, ((0, Hp - H), (0, 0)))

    return dict(
        w1=w1.astype(mxu_dtype), b1=b1.astype(jnp.float32),
        w2=w2.astype(mxu_dtype), b2=b2.astype(jnp.float32),
        H=H, L=L, Hp=Hp, Lp=Lp, tc=tc,
    )


def _choose_tm(N, tile_rows):
    # Small N: one tile, rounded only to the sublane (8) constraint — avoids
    # padding a whole 256-row tile.  Large N: drop 256->128 if padding waste
    # exceeds ~15%.
    if N <= tile_rows:
        return max(_round_up(N, 8), 8)
    tm = tile_rows
    n_pad = _round_up(N, tm)
    if tm > 128 and (n_pad - N) / n_pad > 0.15:
        tm = 128
    return tm


def mlp_layer_forward(x, params, *, tile_rows=None, approximate_gelu=True):
    """x: [..., H] -> [..., L]; matches mlp_Layer.forward in eval mode."""
    H, L, Hp, Lp, tc = (params[k] for k in ("H", "L", "Hp", "Lp", "tc"))
    w1, b1, w2, b2 = params["w1"], params["b1"], params["w2"], params["b2"]

    orig_shape = x.shape
    assert orig_shape[-1] == H
    out_dtype = x.dtype

    x2d = x.reshape(-1, H)
    N = x2d.shape[0]

    if tile_rows is None:
        # Bigger row tiles amortize per-grid-step overhead; keep the f32 x tile
        # VMEM-bounded for large H.
        tile_rows = 512 if H <= 2048 else 256

    tm = _choose_tm(N, tile_rows)
    n_pad = _round_up(N, tm)
    if n_pad != N:
        x2d = jnp.pad(x2d, ((0, n_pad - N), (0, 0)))

    num_k = Hp // tc
    grid = (n_pad // tm, num_k)
    invariant = num_k == 1

    # Grid-invariant weights only need one VMEM buffer; apply when the weights
    # are big enough for the saving to matter.
    weight_bytes = (w1.size * w1.dtype.itemsize + w2.size * w2.dtype.itemsize)
    single_buf = invariant and weight_bytes >= (2 << 20)

    def _w_spec(shape, index_map):
        if single_buf:
            return pl.BlockSpec(shape, index_map, pipeline_mode=pl.Buffered(1))
        return pl.BlockSpec(shape, index_map)

    in_specs = [
        pl.BlockSpec((tm, H), lambda i, k: (i, 0)),   # x (f32, cast in kernel)
        _w_spec((H, tc), lambda i, k: (0, k)),        # W1 chunk (bf16)
        _w_spec((1, tc), lambda i, k: (0, k)),        # b1 chunk (f32)
        _w_spec((tc, Lp), lambda i, k: (k, 0)),       # W2 chunk (bf16)
        _w_spec((1, Lp), lambda i, k: (0, 0)),        # b2 (f32, lane-padded)
    ]
    out_spec = pl.BlockSpec((tm, Lp), lambda i, k: (i, 0))

    bias_bytes = (b1.size + b2.size) * 4
    w_reads = 1 if invariant else grid[0]             # streamed per row tile when chunked
    cost = pl.CostEstimate(
        flops=int(2 * n_pad * H * Hp + 2 * n_pad * Hp * Lp),
        transcendentals=int(n_pad * Hp),
        bytes_accessed=int(n_pad * H * x2d.dtype.itemsize
                           + w_reads * (weight_bytes + bias_bytes)
                           + n_pad * Lp * jnp.dtype(out_dtype).itemsize),
    )

    out = pl.pallas_call(
        _make_mlp_kernel(approximate_gelu),
        out_shape=jax.ShapeDtypeStruct((n_pad, Lp), out_dtype),
        grid=grid,
        in_specs=in_specs,
        out_specs=out_spec,
        scratch_shapes=[pltpu.VMEM((tm, Lp), jnp.float32)],
        compiler_params=pltpu.CompilerParams(
            dimension_semantics=("parallel", "arbitrary"),
            vmem_limit_bytes=_vmem_limit_bytes(),
        ),
        cost_estimate=cost,
    )(x2d, w1, b1, w2, b2)

    return out[:N, :L].reshape(orig_shape[:-1] + (L,))


def init_params(key, hidden_size, num_labels, dtype=jnp.float32):
    # Deterministic init mimicking nn.Linear's uniform(-1/sqrt(fan_in), 1/sqrt(fan_in)).
    # Weights already transposed vs. PyTorch; biases 1-D like nn.Linear.
    k1, k2, k3, k4 = jax.random.split(key, 4)
    lim = 1.0 / math.sqrt(hidden_size)
    w1 = jax.random.uniform(k1, (hidden_size, hidden_size), dtype, -lim, lim)
    b1 = jax.random.uniform(k2, (hidden_size,), dtype, -lim, lim)
    w2 = jax.random.uniform(k3, (hidden_size, num_labels), dtype, -lim, lim)
    b2 = jax.random.uniform(k4, (num_labels,), dtype, -lim, lim)
    return w1, b1, w2, b2


if __name__ == "__main__":
    batch, seq, hidden, num_labels = 2, 8, 32, 2

    key = jax.random.PRNGKey(0)
    kx, kp = jax.random.split(key)
    x = jax.random.normal(kx, (batch, seq, hidden), dtype=jnp.float32)
    w1, b1, w2, b2 = init_params(kp, hidden, num_labels)

    params = prepare_mlp_params(w1, b1, w2, b2)      # one-time bf16 cast + padding
    out = mlp_layer_forward(x, params)
    out = jax.block_until_ready(out)

    # Reference in plain f32 JAX, same tanh-approx GELU as the kernel (the
    # kernel's bf16 MXU operands set the tolerance; tanh vs. exact-erf GELU is
    # an additional ~1e-3-level deviation from nn.GELU()).
    h = x.reshape(-1, hidden) @ w1 + b1
    h = _gelu(h, approximate=True)
    ref = (h @ w2 + b2).reshape(batch, seq, num_labels)

    assert out.shape == (batch, seq, num_labels)
    assert jnp.allclose(out, ref, atol=5e-2, rtol=5e-2), \
        float(jnp.max(jnp.abs(out - ref)))

    print("KERNEL_OK")
</pallas_src>

<mosaic_0001>
module attributes {stable_mosaic.version = 11 : i64} {
  func.func @mlp_kernel(%arg0: i32, %arg1: i32, %arg2: memref<16x32xf32, #tpu.memory_space<vmem>>, %arg3: memref<32x32xbf16, #tpu.memory_space<vmem>>, %arg4: memref<1x32xf32, #tpu.memory_space<vmem>>, %arg5: memref<32x128xbf16, #tpu.memory_space<vmem>>, %arg6: memref<1x128xf32, #tpu.memory_space<vmem>>, %arg7: memref<16x128xf32, #tpu.memory_space<vmem>>, %arg8: memref<16x128xf32, #tpu.memory_space<vmem>>) attributes {dimension_semantics = [#tpu.dimension_semantics<parallel>, #tpu.dimension_semantics<arbitrary>], iteration_bounds = array<i64: 1, 1>, scalar_prefetch = 0 : i64, scratch_operands = 1 : i64, tpu.core_type = #tpu.core_type<tc>, window_params = [{transform_indices = @transform_0, window_bounds = array<i64: 16, 32>}, {transform_indices = @transform_1, window_bounds = array<i64: 32, 32>}, {transform_indices = @transform_2, window_bounds = array<i64: 1, 32>}, {transform_indices = @transform_3, window_bounds = array<i64: 32, 128>}, {pipeline_mode = #tpu.pipeline_mode<synchronous>, transform_indices = @transform_4, window_bounds = array<i64: 1, 128>}, {transform_indices = @transform_5, window_bounds = array<i64: 16, 128>}]} {
    %c0_i32 = arith.constant 0 : i32
    %0 = arith.cmpi eq, %arg1, %c0_i32 : i32
    %1 = arith.extui %0 : i1 to i32
    %c0_i32_0 = arith.constant 0 : i32
    %2 = arith.cmpi ne, %1, %c0_i32_0 : i32
    scf.if %2 {
      %cst_19 = arith.constant 0.000000e+00 : f32
      %32 = vector.broadcast %cst_19 : f32 to vector<16x128xf32>
      %c0_20 = arith.constant 0 : index
      %c0_21 = arith.constant 0 : index
      %33 = vector.load %arg8[%c0_20, %c0_21] : memref<16x128xf32, #tpu.memory_space<vmem>>, vector<16x128xf32>
      tpu.vector_store %arg8[%c0_20, %c0_21], %32 {strides = array<i32>} : memref<16x128xf32, #tpu.memory_space<vmem>>, vector<16x128xf32>,
    } else {
    }
    %c0 = arith.constant 0 : index
    %c0_1 = arith.constant 0 : index
    %3 = vector.load %arg2[%c0, %c0_1] : memref<16x32xf32, #tpu.memory_space<vmem>>, vector<16x32xf32>
    %4 = arith.truncf %3 : vector<16x32xf32> to vector<16x32xbf16>
    %c0_2 = arith.constant 0 : index
    %c0_3 = arith.constant 0 : index
    %5 = vector.load %arg3[%c0_2, %c0_3] : memref<32x32xbf16, #tpu.memory_space<vmem>>, vector<32x32xbf16>
    %cst = arith.constant dense<0.000000e+00> : vector<16x32xf32>
    %6 = tpu.matmul %4, %5, %cst {dimension_numbers = #tpu.dot_dimension_numbers<[1], [0], [0], [1], [0, 0, 1, 1], [], []>} : vector<16x32xbf16>, vector<32x32xbf16>, vector<16x32xf32> -> vector<16x32xf32>
    %c0_4 = arith.constant 0 : index
    %c0_5 = arith.constant 0 : index
    %7 = vector.load %arg4[%c0_4, %c0_5] : memref<1x32xf32, #tpu.memory_space<vmem>>, vector<1x32xf32>
    %8 = vector.broadcast %7 : vector<1x32xf32> to vector<16x32xf32>
    %9 = arith.addf %6, %8 : vector<16x32xf32>
    %cst_6 = arith.constant 5.000000e-01 : f32
    %10 = vector.broadcast %cst_6 : f32 to vector<16x32xf32>
    %11 = arith.mulf %10, %9 : vector<16x32xf32>
    %cst_7 = arith.constant 4.471500e-02 : f32
    %12 = vector.broadcast %cst_7 : f32 to vector<16x32xf32>
    %13 = arith.mulf %12, %9 : vector<16x32xf32>
    %14 = arith.mulf %13, %9 : vector<16x32xf32>
    %15 = arith.mulf %14, %9 : vector<16x32xf32>
    %16 = arith.addf %9, %15 : vector<16x32xf32>
    %cst_8 = arith.constant 0.797884583 : f32
    %17 = vector.broadcast %cst_8 : f32 to vector<16x32xf32>
    %18 = arith.mulf %17, %16 : vector<16x32xf32>
    %19 = math.tanh %18 : vector<16x32xf32>
    %cst_9 = arith.constant 1.000000e+00 : f32
    %20 = vector.broadcast %cst_9 : f32 to vector<16x32xf32>
    %21 = arith.addf %20, %19 : vector<16x32xf32>
    %22 = arith.mulf %11, %21 : vector<16x32xf32>
    %c0_10 = arith.constant 0 : index
    %c0_11 = arith.constant 0 : index
    %23 = vector.load %arg8[%c0_10, %c0_11] : memref<16x128xf32, #tpu.memory_space<vmem>>, vector<16x128xf32>
    %24 = arith.truncf %22 : vector<16x32xf32> to vector<16x32xbf16>
    %c0_12 = arith.constant 0 : index
    %c0_13 = arith.constant 0 : index
    %25 = vector.load %arg5[%c0_12, %c0_13] : memref<32x128xbf16, #tpu.memory_space<vmem>>, vector<32x128xbf16>
    %cst_14 = arith.constant dense<0.000000e+00> : vector<16x128xf32>
    %26 = tpu.matmul %24, %25, %cst_14 {dimension_numbers = #tpu.dot_dimension_numbers<[1], [0], [0], [1], [0, 0, 1, 1], [], []>} : vector<16x32xbf16>, vector<32x128xbf16>, vector<16x128xf32> -> vector<16x128xf32>
    %27 = arith.addf %23, %26 : vector<16x128xf32>
    %c0_15 = arith.constant 0 : index
    %c0_16 = arith.constant 0 : index
    %28 = vector.load %arg8[%c0_15, %c0_16] : memref<16x128xf32, #tpu.memory_space<vmem>>, vector<16x128xf32>
    tpu.vector_store %arg8[%c0_15, %c0_16], %27 {strides = array<i32>} : memref<16x128xf32, #tpu.memory_space<vmem>>, vector<16x128xf32>,
    %c0_i32_17 = arith.constant 0 : i32
    %29 = arith.cmpi eq, %arg1, %c0_i32_17 : i32
    %30 = arith.extui %29 : i1 to i32
    %c0_i32_18 = arith.constant 0 : i32
    %31 = arith.cmpi ne, %30, %c0_i32_18 : i32
    scf.if %31 {
      %c0_19 = arith.constant 0 : index
      %c0_20 = arith.constant 0 : index
      %32 = vector.load %arg8[%c0_19, %c0_20] : memref<16x128xf32, #tpu.memory_space<vmem>>, vector<16x128xf32>
      %c0_21 = arith.constant 0 : index
      %c0_22 = arith.constant 0 : index
      %33 = vector.load %arg6[%c0_21, %c0_22] : memref<1x128xf32, #tpu.memory_space<vmem>>, vector<1x128xf32>
      %34 = vector.broadcast %33 : vector<1x128xf32> to vector<16x128xf32>
      %35 = arith.addf %32, %34 : vector<16x128xf32>
      %c0_23 = arith.constant 0 : index
      %c0_24 = arith.constant 0 : index
      %36 = vector.load %arg7[%c0_23, %c0_24] : memref<16x128xf32, #tpu.memory_space<vmem>>, vector<16x128xf32>
      tpu.vector_store %arg7[%c0_23, %c0_24], %35 {strides = array<i32>} : memref<16x128xf32, #tpu.memory_space<vmem>>, vector<16x128xf32>,
    } else {
    }
    return
  }
  func.func @transform_0(%arg0: i32, %arg1: i32) -> (i32, i32) {
    %c0_i32 = arith.constant 0 : i32
    %c0_i32_0 = arith.constant 0 : i32
    return %arg0, %c0_i32 : i32, i32
  }
  func.func @transform_1(%arg0: i32, %arg1: i32) -> (i32, i32) {
    %c0_i32 = arith.constant 0 : i32
    %c0_i32_0 = arith.constant 0 : i32
    return %c0_i32, %arg1 : i32, i32
  }
  func.func @transform_2(%arg0: i32, %arg1: i32) -> (i32, i32) {
    %c0_i32 = arith.constant 0 : i32
    %c0_i32_0 = arith.constant 0 : i32
    return %c0_i32, %arg1 : i32, i32
  }
  func.func @transform_3(%arg0: i32, %arg1: i32) -> (i32, i32) {
    %c0_i32 = arith.constant 0 : i32
    %c0_i32_0 = arith.constant 0 : i32
    return %arg1, %c0_i32 : i32, i32
  }
  func.func @transform_4(%arg0: i32, %arg1: i32) -> (i32, i32) {
    %c0_i32 = arith.constant 0 : i32
    %c0_i32_0 = arith.constant 0 : i32
    %c0_i32_1 = arith.constant 0 : i32
    return %c0_i32, %c0_i32_0 : i32, i32
  }
  func.func @transform_5(%arg0: i32, %arg1: i32) -> (i32, i32) {
    %c0_i32 = arith.constant 0 : i32
    %c0_i32_0 = arith.constant 0 : i32
    return %arg0, %c0_i32 : i32, i32
  }
}

</mosaic_0001>

<llo_original>
// kernel: tpu_custom_call.1
$region0: #{tpu_custom_call.1}
  #allocation0 [shape = 'u32[]', space=smem, size = 0x4, offset = 0x4, fixed_abs, tag = 'smem constant byte address 0x4 - core index']
  #allocation1 [shape = 'u32[72,128]{1,0:T(1,128)}', space=vmem, size = 0x9000, scoped, tag = 'internal scratch']
  #allocation2 [shape = 'f32[16,128]{1,0:T(8,128)}', space=vmem, size = 0x2000, scoped, tag = 'scratch operand']
  %s0 = inlined_call_operand.hbm [shape: f32[16,32], index: 0, kind: input, shape index: {}]
  %s1 = inlined_call_operand.hbm [shape: bf16[32,32], index: 1, kind: input, shape index: {}]
  %s2 = inlined_call_operand.vmem [shape: f32[1,32], index: 2, kind: input, shape index: {}]
  %s3 = inlined_call_operand.hbm [shape: bf16[32,128], index: 3, kind: input, shape index: {}]
  %s4 = inlined_call_operand.vmem [shape: f32[1,128], index: 4, kind: input, shape index: {}]
  %s5 = inlined_call_operand.hbm [shape: f32[16,128], index: 5, kind: output, shape index: {}]
  %s6 = sld [smem:[#allocation0]]
  $region50: #{tpu_custom_call.1} parent=0
    _
  %s8 = ssub.s32 1, %s6
  %s9 = scalar_select 0, %s8, %s6
  $region1: #{tpu_custom_call.1} parent=0
    #allocation3 [shape = 'u8[8192]{0}', space=vmem, size = 0x2000, scoped, tag = 'input window, operand 0, single buffered']
    #allocation4 [shape = 's32[1]{0}', space=sflag, size = 0x4, scoped, tag = 'scoped memory for tpu_custom_call.1']
    #allocation5 [shape = 's32[1]{0}', space=sflag, size = 0x4, scoped, tag = 'scoped memory for tpu_custom_call.1']
    #allocation6 [shape = 'u8[8192]{0}', space=vmem, size = 0x2000, scoped, tag = 'input window, operand 1, single buffered']
    #allocation7 [shape = 's32[1]{0}', space=sflag, size = 0x4, scoped, tag = 'scoped memory for tpu_custom_call.1']
    #allocation8 [shape = 'u8[8192]{0}', space=vmem, size = 0x2000, scoped, tag = 'input window, operand 3, single buffered']
    #allocation9 [shape = 'u8[8192]{0}', space=vmem, size = 0x2000, scoped, tag = 'output window, operand 0, single buffered']
    %10 = vsyncpa [#allocation4], 0
    %11 = vsyncpa [#allocation7], 0
    %12 = vsyncpa [#allocation5], 0
    // Predicated region
    $region2: #{tpu_custom_call.1} parent=1 // pred_check
      _
    $region3: #{tpu_custom_call.1} parent=1 // pred_check_branch
      %14 = sbr.rel (0) target = $region5
    $region4: #{tpu_custom_call.1} parent=1 // pred_region
      %16 = vsyncadd [#allocation4], 0
      %s17 = sshll.u32 %s0, 4
      %s18 = int_to_ptr.hbm [resolvable:$true] %s17
      %s19 = sshll.u32 [#allocation3], 4
      %s20 = int_to_ptr.vmem [resolvable:$true] %s19
      %25 = dma.hbm_to_vmem [thread:$0]  %s18, 256, %s20, [#allocation4], 128, 128, 8
    $region5: #{tpu_custom_call.1} parent=1 // pred_fallthru
      _
    // Predicated region
    $region6: #{tpu_custom_call.1} parent=1 // pred_check
      _
    $region7: #{tpu_custom_call.1} parent=1 // pred_check_branch
      %27 = sbr.rel (0) target = $region9
    $region8: #{tpu_custom_call.1} parent=1 // pred_region
      %29 = vsyncadd [#allocation7], 0
      %s30 = sshll.u32 %s1, 4
      %s31 = int_to_ptr.hbm [resolvable:$true] %s30
      %s32 = sshll.u32 [#allocation6], 4
      %s33 = int_to_ptr.vmem [resolvable:$true] %s32
      %38 = dma.hbm_to_vmem [thread:$0]  %s31, 256, %s33, [#allocation7], 64, 64, 4
    $region9: #{tpu_custom_call.1} parent=1 // pred_fallthru
      _
    // Predicated region
    $region10: #{tpu_custom_call.1} parent=1 // pred_check
      _
    $region11: #{tpu_custom_call.1} parent=1 // pred_check_branch
      %40 = sbr.rel (0) target = $region13
    $region12: #{tpu_custom_call.1} parent=1 // pred_region
      _
    $region13: #{tpu_custom_call.1} parent=1 // pred_fallthru
      _
    // Predicated region
    $region14: #{tpu_custom_call.1} parent=1 // pred_check
      _
    $region15: #{tpu_custom_call.1} parent=1 // pred_check_branch
      %42 = sbr.rel (0) target = $region17
    $region16: #{tpu_custom_call.1} parent=1 // pred_region
      %44 = vsyncadd [#allocation7], 0
      %s45 = sshll.u32 %s3, 4
      %s46 = int_to_ptr.hbm [resolvable:$true] %s45
      %s47 = sshll.u32 [#allocation8], 4
      %s48 = int_to_ptr.vmem [resolvable:$true] %s47
      %53 = dma.hbm_to_vmem [thread:$0]  %s46, 256, %s48, [#allocation7], 64, 64, 4
    $region17: #{tpu_custom_call.1} parent=1 // pred_fallthru
      _
    // Predicated region
    $region18: #{tpu_custom_call.1} parent=1 // pred_check
      _
    $region19: #{tpu_custom_call.1} parent=1 // pred_check_branch
      %55 = sbr.rel (0) target = $region21
    $region20: #{tpu_custom_call.1} parent=1 // pred_region
      _
    $region21: #{tpu_custom_call.1} parent=1 // pred_fallthru
      _
    // Predicated region
    $region22: #{tpu_custom_call.1} parent=1 // pred_check
      _
    $region23: #{tpu_custom_call.1} parent=1 // pred_check_branch
      %57 = sbr.rel (0) target = $region25
    $region24: #{tpu_custom_call.1} parent=1 // pred_region
      %59 = dma.done [#allocation4], 256
    $region25: #{tpu_custom_call.1} parent=1 // pred_fallthru
      _
    // Predicated region
    $region26: #{tpu_custom_call.1} parent=1 // pred_check
      _
    $region27: #{tpu_custom_call.1} parent=1 // pred_check_branch
      %61 = sbr.rel (0) target = $region29
    $region28: #{tpu_custom_call.1} parent=1 // pred_region
      %63 = dma.done [#allocation7], 256
    $region29: #{tpu_custom_call.1} parent=1 // pred_fallthru
      _
    // Predicated region
    $region30: #{tpu_custom_call.1} parent=1 // pred_check
      _
    $region31: #{tpu_custom_call.1} parent=1 // pred_check_branch
      %65 = sbr.rel (0) target = $region33
    $region32: #{tpu_custom_call.1} parent=1 // pred_region
      %67 = dma.done [#allocation7], 256
    $region33: #{tpu_custom_call.1} parent=1 // pred_fallthru
      _
    %p69 = scmp.eq.s32.totalorder 0, 0
    // Predicated region
    $region34: #{tpu_custom_call.1} parent=1 // pred_check
      %p70 = pneg %p69
    $region35: #{tpu_custom_call.1} parent=1 // pred_check_branch
      %72 = sbr.rel (%p70) target = $region37
    $region36: #{tpu_custom_call.1} parent=1 // pred_region
      %73 = vst [vmem:[#allocation2] sm:$0xff] 0.0
      %74 = vst [vmem:[#allocation2 + $0x8] sm:$0xff] 0.0
    $region37: #{tpu_custom_call.1} parent=1 // pred_fallthru
      _
    %v75 = vld [vmem:[#allocation3] sm:$0xff]
    %v76 = vld [vmem:[#allocation3 + $0x8] sm:$0xff]
    %v77 = vpack.c.bf16 %v76, %v75
    %v78 = vld [vmem:[#allocation6] sm:$0xf]
    %v79 = vld [vmem:[#allocation6 + $0x4] sm:$0xf]
    %v80 = vld [vmem:[#allocation6 + $0x8] sm:$0xf]
    %v81 = vld [vmem:[#allocation6 + $0xc] sm:$0xf]
    %v82 = vld [vmem:[%s2] sm:$0x1]
    %v84 = vperm.slane %v82, 0
    %v90 = vunpack.c.l.b16 %v78
    %v91 = vunpack.c.l.b16 %v79
    %v92 = vunpack.c.l.b16 %v80
    %v93 = vunpack.c.l.b16 %v81
    %v94 = vpack.c.b16 %v91, %v90
    %v95 = vpack.c.b16 %v93, %v92
    %vm98 = vcmask 261120
    %v100 = vsel %vm98, %v77, 0
    %102 = vmatpush.bf16.msra.mxu0 0
    %103 = vmatpush.bf16.msra.mxu0 0
    %104 = vmatpush.bf16.msra.mxu0 0
    %105 = vmatpush.bf16.msra.mxu0 0
    %106 = vmatpush.bf16.msra.mxu0 0
    %107 = vmatpush.bf16.msra.mxu0 0
    %108 = vmatpush.bf16.msra.mxu0 %v95
    %109 = vmatpush.bf16.msra.mxu0 %v94
    %110 = vmatmul.bf16.gmra.mxu0 %v100
    %v111 = vpop.f32.mrf.mxu0
    %v112 = vadd.f32 %v84, %v111
    %v113 = vpop.f32.mrf.mxu0
    %v114 = vadd.f32 %v84, %v113
    %115 = vdwg.mxu0
    %v116 = vmul.f32 %v112, 0.5
    %v117 = vmul.f32 %v114, 0.5
    %v118 = vmul.f32 %v112, 0.044715
    %v119 = vmul.f32 %v114, 0.044715
    %v120 = vmul.f32 %v118, %v112
    %v121 = vmul.f32 %v119, %v114
    %v122 = vmul.f32 %v120, %v112
    %v123 = vmul.f32 %v121, %v114
    %v124 = vadd.f32 %v112, %v122
    %v125 = vadd.f32 %v114, %v123
    %v126 = vmul.f32 %v124, 0.7978846
    %v127 = vmul.f32 %v125, 0.7978846
    %v128 = vtanh.pop %v126
    %v129 = vtanh.pop %v127
    %v130 = vadd.f32 %v128, 1.0
    %v131 = vadd.f32 %v129, 1.0
    %v132 = vmul.f32 %v116, %v130
    %v133 = vmul.f32 %v117, %v131
    %v134 = vld [vmem:[#allocation2] sm:$0xff]
    %v135 = vld [vmem:[#allocation2 + $0x8] sm:$0xff]
    %v136 = vpack.c.bf16 %v133, %v132
    %v137 = vld [vmem:[#allocation8] sm:$0xf]
    %v138 = vld [vmem:[#allocation8 + $0x4] sm:$0xf]
    %v139 = vld [vmem:[#allocation8 + $0x8] sm:$0xf]
    %v140 = vld [vmem:[#allocation8 + $0xc] sm:$0xf]
    %v145 = vunpack.c.l.b16 %v137
    %v146 = vunpack.c.l.b16 %v138
    %v147 = vunpack.c.l.b16 %v139
    %v148 = vunpack.c.l.b16 %v140
    %v149 = vpack.c.b16 %v146, %v145
    %v150 = vpack.c.b16 %v148, %v147
    %v154 = vsel %vm98, %v136, 0
    %156 = vmatpush.bf16.msra.mxu0 0
    %157 = vmatpush.bf16.msra.mxu0 0
    %158 = vmatpush.bf16.msra.mxu0 0
    %159 = vmatpush.bf16.msra.mxu0 0
    %160 = vmatpush.bf16.msra.mxu0 0
    %161 = vmatpush.bf16.msra.mxu0 0
    %162 = vmatpush.bf16.msra.mxu0 %v150
    %163 = vmatpush.bf16.msra.mxu0 %v149
    %164 = vmatmul.bf16.gmra.mxu0 %v154
    %v165 = vpop.f32.mrf.mxu0
    %v166 = vadd.f32 0.0, %v165
    %v167 = vpop.f32.mrf.mxu0
    %v168 = vadd.f32 0.0, %v167
    %169 = vdwg.mxu0
    %v170 = vadd.f32 %v134, %v166
    %v171 = vadd.f32 %v135, %v168
    %172 = vst [vmem:[#allocation2] sm:$0xff] %v170
    %173 = vst [vmem:[#allocation2 + $0x8] sm:$0xff] %v171
    // Predicated region
    $region38: #{tpu_custom_call.1} parent=1 // pred_check
      %p174 = pneg %p69
    $region39: #{tpu_custom_call.1} parent=1 // pred_check_branch
      %176 = sbr.rel (%p174) target = $region41
    $region40: #{tpu_custom_call.1} parent=1 // pred_region
      %v177 = vld [vmem:[#allocation2] sm:$0xff]
      %v178 = vld [vmem:[#allocation2 + $0x8] sm:$0xff]
      %v179 = vld [vmem:[%s4] sm:$0x1]
      %v181 = vperm.slane %v179, 0
      %v183 = vadd.f32 %v177, %v181
      %v184 = vadd.f32 %v178, %v181
      %185 = vst [vmem:[#allocation9] sm:$0xff] %v183
      %186 = vst [vmem:[#allocation9 + $0x8] sm:$0xff] %v184
    $region41: #{tpu_custom_call.1} parent=1 // pred_fallthru
      _
    // Predicated region
    $region42: #{tpu_custom_call.1} parent=1 // pred_check
      _
    $region43: #{tpu_custom_call.1} parent=1 // pred_check_branch
      %188 = sbr.rel (0) target = $region45
    $region44: #{tpu_custom_call.1} parent=1 // pred_region
      %190 = vsyncadd [#allocation5], 0
      %s191 = sshll.u32 [#allocation9], 4
      %s192 = int_to_ptr.vmem [resolvable:$true] %s191
      %s193 = sshll.u32 %s5, 4
      %s194 = int_to_ptr.hbm [resolvable:$true] %s193
      %199 = dma.vmem_to_hbm [thread:$0]  %s192, 256, %s194, [#allocation5], 128, 128, 8
    $region45: #{tpu_custom_call.1} parent=1 // pred_fallthru
      _
    // Predicated region
    $region46: #{tpu_custom_call.1} parent=1 // pred_check
      _
    $region47: #{tpu_custom_call.1} parent=1 // pred_check_branch
      %201 = sbr.rel (0) target = $region49
    $region48: #{tpu_custom_call.1} parent=1 // pred_region
      %203 = dma.done [#allocation5], 256
    $region49: #{tpu_custom_call.1} parent=1 // pred_fallthru
      _
    %204 = vsyncpa [#allocation4], 1
    %205 = vsyncpa [#allocation7], 1
    %206 = vsyncpa [#allocation5], 1

</llo_original>
